<compile_context>
chip_gen: v5e
topology: v5e:2x2
jax: 0.10.0
libtpu: 0.0.40
codegen_flags: <defaults>
</compile_context>

<pallas_src>
import jax
import jax.numpy as jnp
from jax.experimental import pallas as pl
from jax.experimental.pallas import tpu as pltpu


def _gmm_head_kernel(x_ref, w_ref, b_ref, o_ref):
    # x_ref: (tm, D)  w_ref: (D, n)  b_ref: (1, n)  o_ref: (tm, n)
    acc = jnp.dot(x_ref[...], w_ref[...], preferred_element_type=jnp.float32)
    o_ref[...] = (acc + b_ref[...].astype(jnp.float32)).astype(o_ref.dtype)


def gmm_head_forward(x, w_cat, b_cat, *, tm=None, lane_dense=None,
                     vmem_budget_bytes=24 << 20):
    """x: (..., d_model); w_cat: (d_model, 7); b_cat: (7,) -> (..., 7)."""
    orig_shape = x.shape
    d_model = orig_shape[-1]
    x2 = x.reshape(-1, d_model)
    m = x2.shape[0]
    n_out = w_cat.shape[1]
    itemsize = jnp.dtype(x2.dtype).itemsize

    # Lane-dense output: only worth it when D is large enough that the wider
    # (128-lane) writeback is tiny relative to the x read.
    if lane_dense is None:
        lane_dense = d_model >= 512
    if lane_dense:
        n_pad = 128
        w_k = jnp.zeros((d_model, n_pad), w_cat.dtype).at[:, :n_out].set(w_cat)
        b_k = jnp.zeros((1, n_pad), b_cat.dtype).at[:, :n_out].set(
            b_cat.reshape(1, -1))
    else:
        n_pad = n_out
        w_k = w_cat
        b_k = b_cat.reshape(1, -1)

    # Adaptive row tile: largest multiple of 8 whose double-buffered x block
    # fits the VMEM budget; capped at 2048 and at the (rounded-up) row count
    # so small inputs become a single grid step.
    if tm is None:
        max_by_vmem = vmem_budget_bytes // (2 * d_model * itemsize)
        tm = max(8, min(2048, int(max_by_vmem)))
        tm = (tm // 8) * 8
    m_ceil = ((m + 7) // 8) * 8
    tm = min(tm, max(8, m_ceil))
    grid_m = pl.cdiv(m, tm)

    # Explicit VMEM limit with headroom: double-buffered x, out, W, b blocks.
    vmem_bytes = (2 * tm * d_model * itemsize
                  + 2 * tm * n_pad * itemsize
                  + 2 * d_model * n_pad * itemsize
                  + 2 * 1 * n_pad * itemsize)
    vmem_limit = int(min(64 << 20, max(vmem_bytes + (4 << 20), 16 << 20)))

    cost = pl.CostEstimate(
        flops=2 * m * d_model * n_pad,
        transcendentals=0,
        bytes_accessed=(m * d_model * itemsize
                        + m * n_pad * itemsize
                        + d_model * n_pad * itemsize
                        + n_pad * itemsize),
    )

    out = pl.pallas_call(
        _gmm_head_kernel,
        out_shape=jax.ShapeDtypeStruct((m, n_pad), x.dtype),
        grid_spec=pltpu.PrefetchScalarGridSpec(
            num_scalar_prefetch=0,
            grid=(grid_m,),
            in_specs=[
                pl.BlockSpec((tm, d_model), lambda i: (i, 0)),
                pl.BlockSpec((d_model, n_pad), lambda i: (0, 0)),
                pl.BlockSpec((1, n_pad), lambda i: (0, 0)),
            ],
            out_specs=pl.BlockSpec((tm, n_pad), lambda i: (i, 0)),
        ),
        compiler_params=pltpu.CompilerParams(
            dimension_semantics=("parallel",),
            vmem_limit_bytes=vmem_limit,
        ),
        cost_estimate=cost,
    )(x2, w_k, b_k)

    if lane_dense:
        out = out[:, :n_out]
    return out.reshape(*orig_shape[:-1], n_out)


def init_gmm_head_params(key, d_model, dtype=jnp.float32):
    """Synthetic params matching the three nn.Linear layers:
       prob_predictor: (1, d_model), output_model: (5, d_model),
       out_yaw: (1, d_model). Stored pre-concatenated & transposed: (d_model, 7)."""
    k1, k2, k3, k4, k5, k6 = jax.random.split(key, 6)
    bound = 1.0 / jnp.sqrt(d_model)
    w_prob = jax.random.uniform(k1, (1, d_model), dtype, -bound, bound)
    b_prob = jax.random.uniform(k2, (1,), dtype, -bound, bound)
    w_out = jax.random.uniform(k3, (5, d_model), dtype, -bound, bound)
    b_out = jax.random.uniform(k4, (5,), dtype, -bound, bound)
    w_yaw = jax.random.uniform(k5, (1, d_model), dtype, -bound, bound)
    b_yaw = jax.random.uniform(k6, (1,), dtype, -bound, bound)
    # Same order as torch.concat([prob, out_model, yaw], dim=-1).
    w_cat = jnp.concatenate([w_prob, w_out, w_yaw], axis=0).T  # (d_model, 7)
    b_cat = jnp.concatenate([b_prob, b_out, b_yaw], axis=0)    # (7,)
    return w_cat, b_cat


if __name__ == "__main__":
    key = jax.random.PRNGKey(0)
    kx, kp = jax.random.split(key)

    batch, seq, d_model = 2, 8, 32
    x = jax.random.normal(kx, (batch, seq, d_model), dtype=jnp.float32)
    w_cat, b_cat = init_gmm_head_params(kp, d_model)

    out = gmm_head_forward(x, w_cat, b_cat)
    out = jax.block_until_ready(out)

    # Reference check (plain JAX) — same math as the PyTorch module.
    ref = jnp.einsum("bsd,df->bsf", x, w_cat) + b_cat
    assert out.shape == (batch, seq, 7)
    assert jnp.allclose(out, ref, atol=1e-5, rtol=1e-5)

    # Exercise the lane-dense + large-tile + partial-tail path as well.
    d2, m2 = 512, 1000  # non-multiple of tile -> Pallas masks tail block
    x_big = jax.random.normal(kx, (m2, d2), dtype=jnp.float32)
    w2, b2 = init_gmm_head_params(kp, d2)
    out_big = jax.block_until_ready(gmm_head_forward(x_big, w2, b2))
    ref_big = x_big @ w2 + b2
    assert out_big.shape == (m2, 7)
    assert jnp.allclose(out_big, ref_big, atol=1e-4, rtol=1e-4)

    print("KERNEL_OK")
</pallas_src>

<mosaic_0001>
module attributes {stable_mosaic.version = 11 : i64} {
  func.func @_gmm_head_kernel(%arg0: i32, %arg1: memref<16x32xf32, #tpu.memory_space<vmem>>, %arg2: memref<32x7xf32, #tpu.memory_space<vmem>>, %arg3: memref<1x7xf32, #tpu.memory_space<vmem>>, %arg4: memref<16x7xf32, #tpu.memory_space<vmem>>) attributes {dimension_semantics = [#tpu.dimension_semantics<parallel>], iteration_bounds = array<i64: 1>, scalar_prefetch = 0 : i64, scratch_operands = 0 : i64, tpu.core_type = #tpu.core_type<tc>, window_params = [{transform_indices = @transform_0, window_bounds = array<i64: 16, 32>}, {pipeline_mode = #tpu.pipeline_mode<synchronous>, transform_indices = @transform_1, window_bounds = array<i64: 32, 7>}, {pipeline_mode = #tpu.pipeline_mode<synchronous>, transform_indices = @transform_2, window_bounds = array<i64: 1, 7>}, {transform_indices = @transform_3, window_bounds = array<i64: 16, 7>}]} {
    %c0 = arith.constant 0 : index
    %c0_0 = arith.constant 0 : index
    %0 = vector.load %arg1[%c0, %c0_0] : memref<16x32xf32, #tpu.memory_space<vmem>>, vector<16x32xf32>
    %c0_1 = arith.constant 0 : index
    %c0_2 = arith.constant 0 : index
    %1 = vector.load %arg2[%c0_1, %c0_2] : memref<32x7xf32, #tpu.memory_space<vmem>>, vector<32x7xf32>
    %cst = arith.constant dense<0.000000e+00> : vector<16x7xf32>
    %2 = tpu.matmul %0, %1, %cst {dimension_numbers = #tpu.dot_dimension_numbers<[1], [0], [0], [1], [0, 0, 1, 1], [], []>} : vector<16x32xf32>, vector<32x7xf32>, vector<16x7xf32> -> vector<16x7xf32>
    %c0_3 = arith.constant 0 : index
    %c0_4 = arith.constant 0 : index
    %3 = vector.load %arg3[%c0_3, %c0_4] : memref<1x7xf32, #tpu.memory_space<vmem>>, vector<1x7xf32>
    %4 = vector.broadcast %3 : vector<1x7xf32> to vector<16x7xf32>
    %5 = arith.addf %2, %4 : vector<16x7xf32>
    %c0_5 = arith.constant 0 : index
    %c0_6 = arith.constant 0 : index
    %6 = vector.load %arg4[%c0_5, %c0_6] : memref<16x7xf32, #tpu.memory_space<vmem>>, vector<16x7xf32>
    tpu.vector_store %arg4[%c0_5, %c0_6], %5 {strides = array<i32>} : memref<16x7xf32, #tpu.memory_space<vmem>>, vector<16x7xf32>,
    return
  }
  func.func @transform_0(%arg0: i32) -> (i32, i32) {
    %c0_i32 = arith.constant 0 : i32
    %c0_i32_0 = arith.constant 0 : i32
    return %arg0, %c0_i32 : i32, i32
  }
  func.func @transform_1(%arg0: i32) -> (i32, i32) {
    %c0_i32 = arith.constant 0 : i32
    %c0_i32_0 = arith.constant 0 : i32
    %c0_i32_1 = arith.constant 0 : i32
    return %c0_i32, %c0_i32_0 : i32, i32
  }
  func.func @transform_2(%arg0: i32) -> (i32, i32) {
    %c0_i32 = arith.constant 0 : i32
    %c0_i32_0 = arith.constant 0 : i32
    %c0_i32_1 = arith.constant 0 : i32
    return %c0_i32, %c0_i32_0 : i32, i32
  }
  func.func @transform_3(%arg0: i32) -> (i32, i32) {
    %c0_i32 = arith.constant 0 : i32
    %c0_i32_0 = arith.constant 0 : i32
    return %arg0, %c0_i32 : i32, i32
  }
}

</mosaic_0001>

<llo_original>
// kernel: tpu_custom_call.1
$region0: #{tpu_custom_call.1}
  #allocation0 [shape = 'u32[]', space=smem, size = 0x4, offset = 0x4, fixed_abs, tag = 'smem constant byte address 0x4 - core index']
  #allocation1 [shape = 'u32[72,128]{1,0:T(1,128)}', space=vmem, size = 0x9000, scoped, tag = 'internal scratch']
  %s0 = inlined_call_operand.vmem [shape: f32[16,32], index: 0, kind: input, shape index: {}]
  %s1 = inlined_call_operand.vmem [shape: f32[32,7], index: 1, kind: input, shape index: {}]
  %s2 = inlined_call_operand.vmem [shape: f32[1,7], index: 2, kind: input, shape index: {}]
  %s3 = inlined_call_operand.vmem [shape: f32[16,7], index: 3, kind: output, shape index: {}]
  %s4 = sld [smem:[#allocation0]]
  $region22: #{tpu_custom_call.1} parent=0
    _
  %s6 = ssub.s32 1, %s4
  %s7 = scalar_select 0, %s6, %s4
  // Predicated region
  $region2: #{tpu_custom_call.1} parent=0 // pred_check
    _
  $region3: #{tpu_custom_call.1} parent=0 // pred_check_branch
    %9 = sbr.rel (0) target = $region5
  $region4: #{tpu_custom_call.1} parent=0 // pred_region
    _
  $region5: #{tpu_custom_call.1} parent=0 // pred_fallthru
    _
  // Predicated region
  $region6: #{tpu_custom_call.1} parent=0 // pred_check
    _
  $region7: #{tpu_custom_call.1} parent=0 // pred_check_branch
    %11 = sbr.rel (0) target = $region9
  $region8: #{tpu_custom_call.1} parent=0 // pred_region
    _
  $region9: #{tpu_custom_call.1} parent=0 // pred_fallthru
    _
  // Predicated region
  $region10: #{tpu_custom_call.1} parent=0 // pred_check
    _
  $region11: #{tpu_custom_call.1} parent=0 // pred_check_branch
    %13 = sbr.rel (0) target = $region13
  $region12: #{tpu_custom_call.1} parent=0 // pred_region
    _
  $region13: #{tpu_custom_call.1} parent=0 // pred_fallthru
    _
  %v14 = vld [vmem:[%s0] sm:$0xff]
  %v15 = vld [vmem:[%s0 + $0x8] sm:$0xff]
  %v16 = vld [vmem:[%s1] sm:$0xff]
  %v17 = vld [vmem:[%s1 + $0x8] sm:$0xff]
  %v18 = vld [vmem:[%s1 + $0x10] sm:$0xff]
  %v19 = vld [vmem:[%s1 + $0x18] sm:$0xff]
  %v20 = vld [vmem:[%s2] sm:$0x1]
  %v22 = vperm.slane %v20, 0
  %vm24 = vcmask 261120
  %v26 = vsel %vm24, %v14, 0
  %v29 = vsel %vm24, %v15, 0
  %31 = vmatpush.msra.mxu0 0.0
  %32 = vmatpush.msra.mxu0 0.0
  %33 = vmatpush.msra.mxu0 0.0
  %34 = vmatpush.msra.mxu0 0.0
  %35 = vmatpush.msra.mxu0 0.0
  %36 = vmatpush.msra.mxu0 0.0
  %37 = vmatpush.msra.mxu0 0.0
  %38 = vmatpush.msra.mxu0 0.0
  %39 = vmatpush.msra.mxu0 0.0
  %40 = vmatpush.msra.mxu0 0.0
  %41 = vmatpush.msra.mxu0 0.0
  %42 = vmatpush.msra.mxu0 0.0
  %43 = vmatpush.msra.mxu0 %v19
  %44 = vmatpush.msra.mxu0 %v18
  %45 = vmatpush.msra.mxu0 %v17
  %46 = vmatpush.msra.mxu0 %v16
  %47 = vmatmul.f32.gmra.mxu0 %v26
  %v48 = vpop.f32.mrf.mxu0
  %v49 = vadd.f32 %v22, %v48
  %50 = vmatmul.f32.gmra.mxu0 %v29
  %v51 = vpop.f32.mrf.mxu0
  %v52 = vadd.f32 %v22, %v51
  %53 = vdwg.mxu0
  %vm54 = vcmask 56320
  %55 = vst.msk [vmem:[%s3] sm:$0xff] %vm54, %v49
  %56 = vst.msk [vmem:[%s3 + $0x8] sm:$0xff] %vm54, %v52
  // Predicated region
  $region14: #{tpu_custom_call.1} parent=0 // pred_check
    _
  $region15: #{tpu_custom_call.1} parent=0 // pred_check_branch
    %58 = sbr.rel (0) target = $region17
  $region16: #{tpu_custom_call.1} parent=0 // pred_region
    _
  $region17: #{tpu_custom_call.1} parent=0 // pred_fallthru
    _
  // Predicated region
  $region18: #{tpu_custom_call.1} parent=0 // pred_check
    _
  $region19: #{tpu_custom_call.1} parent=0 // pred_check_branch
    %60 = sbr.rel (0) target = $region21
  $region20: #{tpu_custom_call.1} parent=0 // pred_region
    _
  $region21: #{tpu_custom_call.1} parent=0 // pred_fallthru
    _

</llo_original>
